<compile_context>
chip_gen: v5e
topology: v5e:2x2
jax: 0.10.0
libtpu: 0.0.40
codegen_flags: <defaults>
</compile_context>

<pallas_src>
from functools import partial

import jax
import jax.numpy as jnp
from jax.experimental import pallas as pl
from jax.experimental.pallas import tpu as pltpu


def _weighted_state_loss_kernel(pred_ref, targ_ref, w_ref, out_ref, psum_ref, *,
                                batch, length, tb, tl, mask_rows, mask_cols,
                                psum_rows, loss_type):
    p = pred_ref[...]                       # (tb, tl), input dtype
    t = targ_ref[...]                       # (tb, tl)
    w = w_ref[...]                          # (1, tl) -> broadcasts over rows

    diff = p - t
    # TODO(synk): base-class _loss is abstract; default implements squared error
    # (WeightedStateL2). "l1" is also supported via the loss_type parameter.
    if loss_type == "l2":
        base = diff * diff
    else:  # "l1"
        base = jnp.abs(diff)
    wl = base * w                           # promoted (== output) dtype

    out_ref[...] = wl.astype(out_ref.dtype)

    # Partial sum in f32. Mask ragged tail rows/cols of the final blocks (their
    # output writes are dropped automatically, but the reduction is not).
    wl32 = wl.astype(jnp.float32)
    if mask_rows or mask_cols:
        valid = None
        if mask_rows:
            rows = jax.lax.broadcasted_iota(jnp.int32, wl32.shape, 0)
            valid = (pl.program_id(0) * tb + rows) < batch
        if mask_cols:
            cols = jax.lax.broadcasted_iota(jnp.int32, wl32.shape, 1)
            vc = (pl.program_id(1) * tl + cols) < length
            valid = vc if valid is None else (valid & vc)
        wl32 = jnp.where(valid, wl32, 0.0)

    # Lane-dense row-fold: pure vector adds, no scalar reduce + broadcast.
    if psum_rows == 8:
        part = wl32.reshape(tb // 8, 8, tl).sum(axis=0)          # (8, tl)
    else:
        part = jnp.sum(wl32, axis=0, keepdims=True)              # (1, tl)
    psum_ref[...] = part


def _round_up(x, m):
    return ((x + m - 1) // m) * m


def _cdiv(a, b):
    return (a + b - 1) // b


def weighted_state_loss(pred, targ, weights, *, loss_type="l2",
                        target_tile_bytes=8 * 1024 * 1024):
    """Returns (loss * weights, {'a0_loss': weighted_loss_mean}) matching the
    PyTorch module's forward. `target_tile_bytes` is the combined pred+targ+out
    tile traffic per grid step."""
    assert loss_type in ("l2", "l1")
    B, H, T = pred.shape
    assert targ.shape == (B, H, T)
    assert weights.shape == (H, T)

    out_dtype = jnp.promote_types(pred.dtype, weights.dtype)
    in_bytes = jnp.dtype(pred.dtype).itemsize
    out_bytes = jnp.dtype(out_dtype).itemsize
    w_bytes = jnp.dtype(weights.dtype).itemsize

    L = H * T
    pred2 = pred.reshape(B, L)              # contiguous reshape: no copy
    targ2 = targ.reshape(B, L)
    w2 = weights.reshape(1, L)

    # Fallback only for tiny trailing dims: pad to one full 128-lane width so
    # stores are lane-dense. For L >= 128 nothing is padded or sliced, so the
    # kernel is the only pass over HBM.
    if L < 128:
        Lk = 128
        pred2 = jnp.pad(pred2, ((0, 0), (0, Lk - L)))
        targ2 = jnp.pad(targ2, ((0, 0), (0, Lk - L)))
        w2 = jnp.pad(w2, ((0, 0), (0, Lk - L)))
    else:
        Lk = L

    stream_bytes = 2 * in_bytes + out_bytes          # traffic per element

    # Lane-axis tiling only if even an 8-row block would blow the budget.
    if 8 * Lk * stream_bytes > target_tile_bytes:
        tl = max(128, (target_tile_bytes // (8 * stream_bytes)) // 128 * 128)
        tl = min(tl, Lk)
    else:
        tl = Lk
    grid_l = _cdiv(Lk, tl)
    mask_cols = (Lk % tl) != 0

    # Row tile: dtype-aware; combined (pred + targ + out) tile bytes ~= target.
    row_bytes = tl * stream_bytes
    tb = max(8, (target_tile_bytes // row_bytes) // 8 * 8)
    B8 = _round_up(B, 8)
    if B8 >= 16:
        # Guarantee >= 2 batch blocks so the "parallel" axis can feed both
        # TensorCores on v7x (neutral on single-core v5e/v6e).
        tb = min(tb, max(8, (B8 // 2) // 8 * 8))
    if tb >= B:
        tb = B                                       # single full-batch block
    grid_b = _cdiv(B, tb)
    mask_rows = (B % tb) != 0
    psum_rows = 8 if tb % 8 == 0 else 1

    # VMEM limit from actual footprint: double-buffered I/O tiles + f32
    # compute temporaries + slack; capped for v7x's 64 MiB-per-TC budget.
    tile_in = tb * tl * in_bytes
    tile_out = tb * tl * out_bytes
    tile_w = tl * w_bytes
    tile_psum = psum_rows * tl * 4
    vmem_est = 2 * (2 * tile_in + tile_out + tile_w + tile_psum) + 2 * tb * tl * 4
    vmem_limit = int(min(max(vmem_est + (2 << 20), 8 << 20), 48 << 20))

    kernel = partial(_weighted_state_loss_kernel,
                     batch=B, length=Lk, tb=tb, tl=tl,
                     mask_rows=mask_rows, mask_cols=mask_cols,
                     psum_rows=psum_rows, loss_type=loss_type)

    weighted2, partials = pl.pallas_call(
        kernel,
        out_shape=(
            jax.ShapeDtypeStruct((B, Lk), out_dtype),
            jax.ShapeDtypeStruct((grid_b * psum_rows, grid_l * tl), jnp.float32),
        ),
        grid_spec=pltpu.PrefetchScalarGridSpec(
            num_scalar_prefetch=0,
            grid=(grid_b, grid_l),
            in_specs=[
                pl.BlockSpec((tb, tl), lambda i, j: (i, j)),     # pred tile
                pl.BlockSpec((tb, tl), lambda i, j: (i, j)),     # targ tile
                pl.BlockSpec((1, tl), lambda i, j: (0, j)),      # weights row
            ],
            out_specs=(
                pl.BlockSpec((tb, tl), lambda i, j: (i, j)),             # weighted loss
                pl.BlockSpec((psum_rows, tl), lambda i, j: (i, j)),      # partial sums
            ),
        ),
        compiler_params=pltpu.CompilerParams(
            dimension_semantics=("parallel", "parallel"),
            vmem_limit_bytes=vmem_limit,
        ),
    )(pred2, targ2, w2)

    if Lk != L:
        weighted2 = weighted2[:, :L]
    weighted = weighted2.reshape(B, H, T)
    a0_loss = jnp.sum(partials) / jnp.float32(B * H * T)
    return weighted, {"a0_loss": a0_loss}


if __name__ == "__main__":
    key = jax.random.PRNGKey(0)
    B, H, T = 2, 8, 32  # batch, horizon, transition_dim

    k1, k2 = jax.random.split(key)
    pred = jax.random.normal(k1, (B, H, T), dtype=jnp.float32)
    targ = jax.random.normal(k2, (B, H, T), dtype=jnp.float32)

    # Deterministic synthetic weights (diffuser-style horizon discounting).
    discount = 0.99 ** jnp.arange(H, dtype=jnp.float32)           # [H]
    weights = jnp.broadcast_to(discount[:, None], (H, T)).astype(jnp.float32)

    weighted, info = weighted_state_loss(pred, targ, weights)
    weighted = jax.block_until_ready(weighted)
    a0 = jax.block_until_ready(info["a0_loss"])

    # Pure-JAX reference check.
    ref_loss = (pred - targ) ** 2
    ref_weighted = ref_loss * weights[None, :, :]
    ref_mean = ref_weighted.mean()
    assert jnp.allclose(weighted, ref_weighted, rtol=1e-5, atol=1e-5)
    assert jnp.allclose(a0, ref_mean, rtol=1e-5, atol=1e-5)

    print("KERNEL_OK")
</pallas_src>

<mosaic_0001>
module attributes {stable_mosaic.version = 11 : i64} {
  func.func @_weighted_state_loss_kernel(%arg0: i32, %arg1: i32, %arg2: memref<2x256xf32, #tpu.memory_space<vmem>>, %arg3: memref<2x256xf32, #tpu.memory_space<vmem>>, %arg4: memref<1x256xf32, #tpu.memory_space<vmem>>, %arg5: memref<2x256xf32, #tpu.memory_space<vmem>>, %arg6: memref<1x256xf32, #tpu.memory_space<vmem>>) attributes {dimension_semantics = [#tpu.dimension_semantics<parallel>, #tpu.dimension_semantics<parallel>], iteration_bounds = array<i64: 1, 1>, scalar_prefetch = 0 : i64, scratch_operands = 0 : i64, tpu.core_type = #tpu.core_type<tc>, window_params = [{transform_indices = @transform_0, window_bounds = array<i64: 2, 256>}, {transform_indices = @transform_1, window_bounds = array<i64: 2, 256>}, {transform_indices = @transform_2, window_bounds = array<i64: 1, 256>}, {transform_indices = @transform_3, window_bounds = array<i64: 2, 256>}, {transform_indices = @transform_4, window_bounds = array<i64: 1, 256>}]} {
    %c0 = arith.constant 0 : index
    %c0_0 = arith.constant 0 : index
    %0 = vector.load %arg2[%c0, %c0_0] : memref<2x256xf32, #tpu.memory_space<vmem>>, vector<2x256xf32>
    %c0_1 = arith.constant 0 : index
    %c0_2 = arith.constant 0 : index
    %1 = vector.load %arg3[%c0_1, %c0_2] : memref<2x256xf32, #tpu.memory_space<vmem>>, vector<2x256xf32>
    %c0_3 = arith.constant 0 : index
    %c0_4 = arith.constant 0 : index
    %2 = vector.load %arg4[%c0_3, %c0_4] : memref<1x256xf32, #tpu.memory_space<vmem>>, vector<1x256xf32>
    %3 = arith.subf %0, %1 : vector<2x256xf32>
    %4 = arith.mulf %3, %3 : vector<2x256xf32>
    %5 = vector.broadcast %2 : vector<1x256xf32> to vector<2x256xf32>
    %6 = arith.mulf %4, %5 : vector<2x256xf32>
    %c0_5 = arith.constant 0 : index
    %c0_6 = arith.constant 0 : index
    %7 = vector.load %arg5[%c0_5, %c0_6] : memref<2x256xf32, #tpu.memory_space<vmem>>, vector<2x256xf32>
    tpu.vector_store %arg5[%c0_5, %c0_6], %6 {strides = array<i32>} : memref<2x256xf32, #tpu.memory_space<vmem>>, vector<2x256xf32>,
    %cst = arith.constant dense<0.000000e+00> : vector<256xf32>
    %8 = vector.multi_reduction <add>, %6, %cst [0] : vector<2x256xf32> to vector<256xf32>
    %9 = vector.shape_cast %8 : vector<256xf32> to vector<1x256xf32>
    %c0_7 = arith.constant 0 : index
    %c0_8 = arith.constant 0 : index
    %10 = vector.load %arg6[%c0_7, %c0_8] : memref<1x256xf32, #tpu.memory_space<vmem>>, vector<1x256xf32>
    tpu.vector_store %arg6[%c0_7, %c0_8], %9 {strides = array<i32>} : memref<1x256xf32, #tpu.memory_space<vmem>>, vector<1x256xf32>,
    return
  }
  func.func @transform_0(%arg0: i32, %arg1: i32) -> (i32, i32) {
    %c0_i32 = arith.constant 0 : i32
    return %arg0, %arg1 : i32, i32
  }
  func.func @transform_1(%arg0: i32, %arg1: i32) -> (i32, i32) {
    %c0_i32 = arith.constant 0 : i32
    return %arg0, %arg1 : i32, i32
  }
  func.func @transform_2(%arg0: i32, %arg1: i32) -> (i32, i32) {
    %c0_i32 = arith.constant 0 : i32
    %c0_i32_0 = arith.constant 0 : i32
    return %c0_i32, %arg1 : i32, i32
  }
  func.func @transform_3(%arg0: i32, %arg1: i32) -> (i32, i32) {
    %c0_i32 = arith.constant 0 : i32
    return %arg0, %arg1 : i32, i32
  }
  func.func @transform_4(%arg0: i32, %arg1: i32) -> (i32, i32) {
    %c0_i32 = arith.constant 0 : i32
    return %arg0, %arg1 : i32, i32
  }
}

</mosaic_0001>

<llo_original>
// kernel: tpu_custom_call.1
$region0: #{tpu_custom_call.1}
  #allocation0 [shape = 'u32[]', space=smem, size = 0x4, offset = 0x4, fixed_abs, tag = 'smem constant byte address 0x4 - core index']
  #allocation1 [shape = 'u32[72,128]{1,0:T(1,128)}', space=vmem, size = 0x9000, scoped, tag = 'internal scratch']
  %s0 = inlined_call_operand.hbm [shape: f32[2,256], index: 0, kind: input, shape index: {}]
  %s1 = inlined_call_operand.hbm [shape: f32[2,256], index: 1, kind: input, shape index: {}]
  %s2 = inlined_call_operand.hbm [shape: f32[1,256], index: 2, kind: input, shape index: {}]
  %s3 = inlined_call_operand.hbm [shape: f32[2,256], index: 3, kind: output, shape index: {0}]
  %s4 = inlined_call_operand.hbm [shape: f32[1,256], index: 4, kind: output, shape index: {1}]
  %5 = xla_tuple %s3, %s4
  %s6 = sld [smem:[#allocation0]]
  $region42: #{tpu_custom_call.1} parent=0
    _
  %s8 = ssub.s32 1, %s6
  %s9 = scalar_select 0, %s8, %s6
  $region1: #{tpu_custom_call.1} parent=0
    #allocation2 [shape = 'u8[2048]{0}', space=vmem, size = 0x800, scoped, tag = 'input window, operand 0, single buffered']
    #allocation3 [shape = 's32[1]{0}', space=sflag, size = 0x4, scoped, tag = 'scoped memory for tpu_custom_call.1']
    #allocation4 [shape = 's32[1]{0}', space=sflag, size = 0x4, scoped, tag = 'scoped memory for tpu_custom_call.1']
    #allocation5 [shape = 'u8[2048]{0}', space=vmem, size = 0x800, scoped, tag = 'input window, operand 1, single buffered']
    #allocation6 [shape = 's32[1]{0}', space=sflag, size = 0x4, scoped, tag = 'scoped memory for tpu_custom_call.1']
    #allocation7 [shape = 'u8[1024]{0}', space=vmem, size = 0x400, scoped, tag = 'input window, operand 2, single buffered']
    #allocation8 [shape = 'u8[2048]{0}', space=vmem, size = 0x800, scoped, tag = 'output window, operand 0, single buffered']
    #allocation9 [shape = 'u8[1024]{0}', space=vmem, size = 0x400, scoped, tag = 'output window, operand 1, single buffered']
    #allocation10 [shape = 's32[1]{0}', space=sflag, size = 0x4, scoped, tag = 'scoped memory for tpu_custom_call.1']
    %10 = vsyncpa [#allocation3], 0
    %11 = vsyncpa [#allocation6], 0
    %12 = vsyncpa [#allocation4], 0
    %13 = vsyncpa [#allocation10], 0
    // Predicated region
    $region2: #{tpu_custom_call.1} parent=1 // pred_check
      _
    $region3: #{tpu_custom_call.1} parent=1 // pred_check_branch
      %15 = sbr.rel (0) target = $region5
    $region4: #{tpu_custom_call.1} parent=1 // pred_region
      %17 = vsyncadd [#allocation3], 0
      %s19 = sshll.u32 %s0, 4
      %s20 = int_to_ptr.hbm [resolvable:$true] %s19
      %s21 = sshll.u32 [#allocation2], 4
      %s22 = int_to_ptr.vmem [resolvable:$true] %s21
      %24 = dma.hbm_to_vmem [thread:$0]  %s20, 64, %s22, [#allocation3]
    $region5: #{tpu_custom_call.1} parent=1 // pred_fallthru
      _
    // Predicated region
    $region6: #{tpu_custom_call.1} parent=1 // pred_check
      _
    $region7: #{tpu_custom_call.1} parent=1 // pred_check_branch
      %26 = sbr.rel (0) target = $region9
    $region8: #{tpu_custom_call.1} parent=1 // pred_region
      %28 = vsyncadd [#allocation6], 0
      %s30 = sshll.u32 %s1, 4
      %s31 = int_to_ptr.hbm [resolvable:$true] %s30
      %s32 = sshll.u32 [#allocation5], 4
      %s33 = int_to_ptr.vmem [resolvable:$true] %s32
      %35 = dma.hbm_to_vmem [thread:$0]  %s31, 64, %s33, [#allocation6]
    $region9: #{tpu_custom_call.1} parent=1 // pred_fallthru
      _
    // Predicated region
    $region10: #{tpu_custom_call.1} parent=1 // pred_check
      _
    $region11: #{tpu_custom_call.1} parent=1 // pred_check_branch
      %37 = sbr.rel (0) target = $region13
    $region12: #{tpu_custom_call.1} parent=1 // pred_region
      %39 = vsyncadd [#allocation6], 0
      %s41 = sshll.u32 %s2, 4
      %s42 = int_to_ptr.hbm [resolvable:$true] %s41
      %s43 = sshll.u32 [#allocation7], 4
      %s44 = int_to_ptr.vmem [resolvable:$true] %s43
      %46 = dma.hbm_to_vmem [thread:$0]  %s42, 32, %s44, [#allocation6]
    $region13: #{tpu_custom_call.1} parent=1 // pred_fallthru
      _
    // Predicated region
    $region14: #{tpu_custom_call.1} parent=1 // pred_check
      _
    $region15: #{tpu_custom_call.1} parent=1 // pred_check_branch
      %48 = sbr.rel (0) target = $region17
    $region16: #{tpu_custom_call.1} parent=1 // pred_region
      %50 = dma.done [#allocation3], 64
    $region17: #{tpu_custom_call.1} parent=1 // pred_fallthru
      _
    // Predicated region
    $region18: #{tpu_custom_call.1} parent=1 // pred_check
      _
    $region19: #{tpu_custom_call.1} parent=1 // pred_check_branch
      %52 = sbr.rel (0) target = $region21
    $region20: #{tpu_custom_call.1} parent=1 // pred_region
      %54 = dma.done [#allocation6], 64
    $region21: #{tpu_custom_call.1} parent=1 // pred_fallthru
      _
    // Predicated region
    $region22: #{tpu_custom_call.1} parent=1 // pred_check
      _
    $region23: #{tpu_custom_call.1} parent=1 // pred_check_branch
      %56 = sbr.rel (0) target = $region25
    $region24: #{tpu_custom_call.1} parent=1 // pred_region
      %58 = dma.done [#allocation6], 32
    $region25: #{tpu_custom_call.1} parent=1 // pred_fallthru
      _
    %v59 = vld [vmem:[#allocation2] sm:$0xf]
    %v60 = vld [vmem:[#allocation5] sm:$0xf]
    %v61 = vld [vmem:[#allocation7] sm:$0x3]
    %v62 = vsub.f32 %v59, %v60
    %v63 = vmul.f32 %v62, %v62
    %v65 = vperm.slane %v61, 0
    %v66 = vperm.slane %v61, 1
    %v67 = vrot.slane %v66, 6
    %vm68 = vcmask 1041408
    %v69 = vsel %vm68, %v65, %v67
    %v71 = vmul.f32 %v63, %v69
    %72 = vst [vmem:[#allocation8] sm:$0xf] %v71
    %74 = vst [vmem:[#allocation1] ss:$4 sm:$0xff] %v71
    %v75 = vld.sshfl [vmem:[#allocation1] sm:$0xff pattern:$0x73625140]
    %v76 = vld.sshfl [vmem:[#allocation1 + $0x8] sm:$0xff pattern:$0x73625140]
    %v79 = vsel %vm68, %v75, 0.0
    %v80 = vrot.slane %v79, 4
    %v81 = vadd.f32 %v79, %v80
    %v82 = vrot.slane %v81, 2
    %v83 = vadd.f32 %v81, %v82
    %v84 = vrot.slane %v83, 1
    %v85 = vadd.f32 %v83, %v84
    %v86 = vsel %vm68, %v76, 0.0
    %v87 = vrot.slane %v86, 4
    %v88 = vadd.f32 %v86, %v87
    %v89 = vrot.slane %v88, 2
    %v90 = vadd.f32 %v88, %v89
    %v91 = vrot.slane %v90, 1
    %v92 = vadd.f32 %v90, %v91
    %v95 = vrot.slane %v92, 7
    %vm96 = vcmask 1040384
    %v97 = vsel %vm96, %v85, %v95
    %v99 = vlaneseq
    %vm100 = vcmp.ge.s32.totalorder %v99, 0
    %vm101 = vcmp.lt.s32.totalorder %v99, 256
    %vm102 = vmand %vm100, %vm101
    %103 = vst.msk [vmem:[#allocation9] sm:$0x3] %vm102, %v97
    // Predicated region
    $region26: #{tpu_custom_call.1} parent=1 // pred_check
      _
    $region27: #{tpu_custom_call.1} parent=1 // pred_check_branch
      %105 = sbr.rel (0) target = $region29
    $region28: #{tpu_custom_call.1} parent=1 // pred_region
      %107 = vsyncadd [#allocation4], 0
      %s109 = sshll.u32 [#allocation8], 4
      %s110 = int_to_ptr.vmem [resolvable:$true] %s109
      %s111 = sshll.u32 %s3, 4
      %s112 = int_to_ptr.hbm [resolvable:$true] %s111
      %114 = dma.vmem_to_hbm [thread:$0]  %s110, 64, %s112, [#allocation4]
    $region29: #{tpu_custom_call.1} parent=1 // pred_fallthru
      _
    // Predicated region
    $region30: #{tpu_custom_call.1} parent=1 // pred_check
      _
    $region31: #{tpu_custom_call.1} parent=1 // pred_check_branch
      %116 = sbr.rel (0) target = $region33
    $region32: #{tpu_custom_call.1} parent=1 // pred_region
      %118 = vsyncadd [#allocation10], 0
      %s120 = sshll.u32 [#allocation9], 4
      %s121 = int_to_ptr.vmem [resolvable:$true] %s120
      %s122 = sshll.u32 %s4, 4
      %s123 = int_to_ptr.hbm [resolvable:$true] %s122
      %125 = dma.vmem_to_hbm [thread:$0]  %s121, 32, %s123, [#allocation10]
    $region33: #{tpu_custom_call.1} parent=1 // pred_fallthru
      _
    // Predicated region
    $region34: #{tpu_custom_call.1} parent=1 // pred_check
      _
    $region35: #{tpu_custom_call.1} parent=1 // pred_check_branch
      %127 = sbr.rel (0) target = $region37
    $region36: #{tpu_custom_call.1} parent=1 // pred_region
      %129 = dma.done [#allocation4], 64
    $region37: #{tpu_custom_call.1} parent=1 // pred_fallthru
      _
    // Predicated region
    $region38: #{tpu_custom_call.1} parent=1 // pred_check
      _
    $region39: #{tpu_custom_call.1} parent=1 // pred_check_branch
      %131 = sbr.rel (0) target = $region41
    $region40: #{tpu_custom_call.1} parent=1 // pred_region
      %133 = dma.done [#allocation10], 32
    $region41: #{tpu_custom_call.1} parent=1 // pred_fallthru
      _
    %134 = vsyncpa [#allocation3], 1
    %135 = vsyncpa [#allocation6], 1
    %136 = vsyncpa [#allocation4], 1
    %137 = vsyncpa [#allocation10], 1

</llo_original>
